<compile_context>
chip_gen: v7x
topology: tpu7x:2x2x1
jax: 0.10.0
libtpu: 0.0.40
codegen_flags: <defaults>
</compile_context>

<pallas_src>
import jax
import jax.numpy as jnp
from jax.experimental import pallas as pl
from jax.experimental.pallas import tpu as pltpu


def critic_kernel(s_ref, a_ref, w1s_ref, w1a_ref, b1_ref, w2_ref, b2_ref,
                  w3_ref, b3_ref, out_ref):
    mm = w1s_ref.dtype  # MXU operand dtype (bf16 by default); f32 accumulate.

    # Layer 1: cat([s, a]) @ W1 + b1 expressed as two dots against the split
    # halves of W1.T (no wrapper concat, no K padding, no extra HBM pass).
    h1 = (jnp.dot(s_ref[...].astype(mm), w1s_ref[...],
                  preferred_element_type=jnp.float32)
          + jnp.dot(a_ref[...].astype(mm), w1a_ref[...],
                    preferred_element_type=jnp.float32)
          + b1_ref[...])
    h1 = jnp.maximum(h1, 0.0)                      # f32 epilogue (VPU)

    # Layer 2: h1 @ W2 + b2, ReLU.
    h2 = (jnp.dot(h1.astype(mm), w2_ref[...],
                  preferred_element_type=jnp.float32)
          + b2_ref[...])
    h2 = jnp.maximum(h2, 0.0)

    # Layer 3 (out_features == 1): VPU multiply, fold 128-lane groups
    # pairwise with plain VPU adds (halves the XLU work), then one
    # 128-lane cross-lane reduce.  Keeps layer 3 off the MXU entirely.
    p = h2 * w3_ref[...]                           # [tb, u1] f32
    n = p.shape[-1]
    while n >= 256 and n % 256 == 0:               # static unroll at trace time
        half = n // 2
        p = p[:, :half] + p[:, half:]
        n = half
    q = jnp.sum(p, axis=-1, keepdims=True) + b3_ref[0, 0]
    out_ref[...] = q.astype(out_ref.dtype)


def prepare_params(params, state_dim, action_dim, matmul_dtype=jnp.bfloat16):
    """One-time weight preprocessing, hoisted out of the per-call hot path.

    params (PyTorch nn.Linear layout, [out_features, in_features]):
      w1: [u0, state_dim+action_dim], b1: [u0]
      w2: [u1, u0],                   b2: [u1]
      w3: [1, u1],                    b3: [1]

    W1 is transposed to (in, out) and split into its `states` / `actions`
    row-halves so the kernel never needs a concatenated input.  w3/b3 stay
    f32 (layer 3 runs on the VPU/XLU, not the MXU).
    """
    w1_t = jnp.transpose(params["w1"]).astype(matmul_dtype)      # [in, u0]
    return {
        "w1s": w1_t[:state_dim],                                 # [S, u0]
        "w1a": w1_t[state_dim:state_dim + action_dim],           # [A, u0]
        "b1": params["b1"].reshape(1, -1).astype(jnp.float32),   # [1, u0]
        "w2": jnp.transpose(params["w2"]).astype(matmul_dtype),  # [u0, u1]
        "b2": params["b2"].reshape(1, -1).astype(jnp.float32),   # [1, u1]
        "w3": params["w3"].reshape(1, -1).astype(jnp.float32),   # [1, u1]
        "b3": params["b3"].reshape(1, 1).astype(jnp.float32),    # [1, 1] SMEM
    }


def _batch_tile(B, block_b, num_cores=2):
    """Pick the batch tile: as large as possible (small tiles are grid-step-
    overhead bound), with a grid length that is a multiple of `num_cores`
    once B is big enough, so both v7x TensorCores get work."""
    if B <= 8 * num_cores:
        return B                                   # tiny batch: single tile
    n_tiles = -(-B // block_b)                     # minimum tiles at the cap
    n_tiles = -(-n_tiles // num_cores) * num_cores  # multiple of num_cores
    tb = -(-B // n_tiles)                          # even share per tile
    tb = -(-tb // 8) * 8                           # sublane multiple
    return min(tb, block_b)


def critic_forward(states, actions, prep, *, block_b=4096):
    """Critic forward pass as one batch-tiled Pallas kernel."""
    B, state_dim = states.shape
    action_dim = actions.shape[1]
    u0 = prep["w1s"].shape[1]
    u1 = prep["w2"].shape[1]

    tb = _batch_tile(B, block_b)
    grid = (pl.cdiv(B, tb),)

    # Weights/biases: same block every tile -> stay VMEM-resident.
    const = lambda i: (0, 0)

    return pl.pallas_call(
        critic_kernel,
        out_shape=jax.ShapeDtypeStruct((B, 1), jnp.float32),
        grid=grid,
        in_specs=[
            pl.BlockSpec((tb, state_dim), lambda i: (i, 0)),     # states
            pl.BlockSpec((tb, action_dim), lambda i: (i, 0)),    # actions
            pl.BlockSpec((state_dim, u0), const),                # W1.T states half
            pl.BlockSpec((action_dim, u0), const),               # W1.T actions half
            pl.BlockSpec((1, u0), const),                        # b1
            pl.BlockSpec((u0, u1), const),                       # W2.T
            pl.BlockSpec((1, u1), const),                        # b2
            pl.BlockSpec((1, u1), const),                        # w3 row (f32)
            pl.BlockSpec(memory_space=pltpu.MemorySpace.SMEM),   # b3 scalar
        ],
        out_specs=pl.BlockSpec((tb, 1), lambda i: (i, 0)),
        compiler_params=pltpu.CompilerParams(
            dimension_semantics=("parallel",),
            vmem_limit_bytes=32 * 1024 * 1024),
    )(states, actions, prep["w1s"], prep["w1a"], prep["b1"],
      prep["w2"], prep["b2"], prep["w3"], prep["b3"])


def init_params(key, state_dim, action_dim, units=(256, 256)):
    """Deterministic synthetic parameters (PyTorch Linear shapes)."""
    k1, k2, k3, k4, k5, k6 = jax.random.split(key, 6)
    in1 = state_dim + action_dim
    scale = 0.05
    return {
        "w1": scale * jax.random.normal(k1, (units[0], in1), jnp.float32),
        "b1": scale * jax.random.normal(k2, (units[0],), jnp.float32),
        "w2": scale * jax.random.normal(k3, (units[1], units[0]), jnp.float32),
        "b2": scale * jax.random.normal(k4, (units[1],), jnp.float32),
        "w3": scale * jax.random.normal(k5, (1, units[1]), jnp.float32),
        "b3": scale * jax.random.normal(k6, (1,), jnp.float32),
    }


def critic_reference(states, actions, params):
    """Pure-JAX reference matching the PyTorch module semantics."""
    x = jnp.concatenate([states, actions], axis=1)
    h = jax.nn.relu(x @ params["w1"].T + params["b1"])
    h = jax.nn.relu(h @ params["w2"].T + params["b2"])
    return h @ params["w3"].T + params["b3"]


if __name__ == "__main__":
    # Small shapes consistent with the module's forward:
    #   states [B, state_dim], actions [B, action_dim], units = [256, 256].
    B, STATE_DIM, ACTION_DIM = 8, 24, 4
    UNITS = (256, 256)

    key = jax.random.PRNGKey(0)
    ks, ka, kp = jax.random.split(key, 3)
    states = jax.random.normal(ks, (B, STATE_DIM), jnp.float32)
    actions = jax.random.normal(ka, (B, ACTION_DIM), jnp.float32)
    params = init_params(kp, STATE_DIM, ACTION_DIM, UNITS)

    ref = critic_reference(states, actions, params)
    critic_fn = jax.jit(critic_forward)

    # Exact path (f32 MXU operands): tight tolerance vs the JAX reference.
    prep_f32 = prepare_params(params, STATE_DIM, ACTION_DIM,
                              matmul_dtype=jnp.float32)
    out_f32 = jax.block_until_ready(critic_fn(states, actions, prep_f32))
    assert out_f32.shape == (B, 1), out_f32.shape
    assert jnp.allclose(out_f32, ref, atol=1e-4, rtol=1e-4), (
        float(jnp.max(jnp.abs(out_f32 - ref))))

    # Default fast path (bf16 MXU operands, f32 accumulation/epilogue):
    # looser tolerance appropriate for bf16 operand rounding.
    prep_bf16 = prepare_params(params, STATE_DIM, ACTION_DIM)
    out_bf16 = jax.block_until_ready(critic_fn(states, actions, prep_bf16))
    assert out_bf16.shape == (B, 1), out_bf16.shape
    assert jnp.allclose(out_bf16, ref, atol=2e-2, rtol=2e-2), (
        float(jnp.max(jnp.abs(out_bf16 - ref))))

    print("KERNEL_OK")
</pallas_src>

<mosaic_0001>
module attributes {stable_mosaic.version = 11 : i64} {
  func.func @critic_kernel(%arg0: i32, %arg1: memref<8x24xf32, #tpu.memory_space<vmem>>, %arg2: memref<8x4xf32, #tpu.memory_space<vmem>>, %arg3: memref<24x256xf32, #tpu.memory_space<vmem>>, %arg4: memref<4x256xf32, #tpu.memory_space<vmem>>, %arg5: memref<1x256xf32, #tpu.memory_space<vmem>>, %arg6: memref<256x256xf32, #tpu.memory_space<vmem>>, %arg7: memref<1x256xf32, #tpu.memory_space<vmem>>, %arg8: memref<1x256xf32, #tpu.memory_space<vmem>>, %arg9: memref<1x1xf32, #tpu.memory_space<smem>>, %arg10: memref<8x1xf32, #tpu.memory_space<vmem>>) attributes {dimension_semantics = [#tpu.dimension_semantics<parallel>], iteration_bounds = array<i64: 1>, scalar_prefetch = 0 : i64, scratch_operands = 0 : i64, tpu.core_type = #tpu.core_type<tc>, window_params = [{transform_indices = @transform_0, window_bounds = array<i64: 8, 24>}, {transform_indices = @transform_1, window_bounds = array<i64: 8, 4>}, {pipeline_mode = #tpu.pipeline_mode<synchronous>, transform_indices = @transform_2, window_bounds = array<i64: 24, 256>}, {pipeline_mode = #tpu.pipeline_mode<synchronous>, transform_indices = @transform_3, window_bounds = array<i64: 4, 256>}, {pipeline_mode = #tpu.pipeline_mode<synchronous>, transform_indices = @transform_4, window_bounds = array<i64: 1, 256>}, {pipeline_mode = #tpu.pipeline_mode<synchronous>, transform_indices = @transform_5, window_bounds = array<i64: 256, 256>}, {pipeline_mode = #tpu.pipeline_mode<synchronous>, transform_indices = @transform_6, window_bounds = array<i64: 1, 256>}, {pipeline_mode = #tpu.pipeline_mode<synchronous>, transform_indices = @transform_7, window_bounds = array<i64: 1, 256>}, {transform_indices = @transform_8, window_bounds = array<i64: 1, 1>}, {transform_indices = @transform_9, window_bounds = array<i64: 8, 1>}]} {
    %c0 = arith.constant 0 : index
    %c0_0 = arith.constant 0 : index
    %0 = vector.load %arg1[%c0, %c0_0] : memref<8x24xf32, #tpu.memory_space<vmem>>, vector<8x24xf32>
    %c0_1 = arith.constant 0 : index
    %c0_2 = arith.constant 0 : index
    %1 = vector.load %arg3[%c0_1, %c0_2] : memref<24x256xf32, #tpu.memory_space<vmem>>, vector<24x256xf32>
    %cst = arith.constant dense<0.000000e+00> : vector<8x256xf32>
    %2 = tpu.matmul %0, %1, %cst {dimension_numbers = #tpu.dot_dimension_numbers<[1], [0], [0], [1], [0, 0, 1, 1], [], []>} : vector<8x24xf32>, vector<24x256xf32>, vector<8x256xf32> -> vector<8x256xf32>
    %c0_3 = arith.constant 0 : index
    %c0_4 = arith.constant 0 : index
    %3 = vector.load %arg2[%c0_3, %c0_4] : memref<8x4xf32, #tpu.memory_space<vmem>>, vector<8x4xf32>
    %c0_5 = arith.constant 0 : index
    %c0_6 = arith.constant 0 : index
    %4 = vector.load %arg4[%c0_5, %c0_6] : memref<4x256xf32, #tpu.memory_space<vmem>>, vector<4x256xf32>
    %cst_7 = arith.constant dense<0.000000e+00> : vector<8x256xf32>
    %5 = tpu.matmul %3, %4, %cst_7 {dimension_numbers = #tpu.dot_dimension_numbers<[1], [0], [0], [1], [0, 0, 1, 1], [], []>} : vector<8x4xf32>, vector<4x256xf32>, vector<8x256xf32> -> vector<8x256xf32>
    %6 = arith.addf %2, %5 : vector<8x256xf32>
    %c0_8 = arith.constant 0 : index
    %c0_9 = arith.constant 0 : index
    %7 = vector.load %arg5[%c0_8, %c0_9] : memref<1x256xf32, #tpu.memory_space<vmem>>, vector<1x256xf32>
    %8 = vector.broadcast %7 : vector<1x256xf32> to vector<8x256xf32>
    %9 = arith.addf %6, %8 : vector<8x256xf32>
    %cst_10 = arith.constant 0.000000e+00 : f32
    %10 = vector.broadcast %cst_10 : f32 to vector<8x256xf32>
    %11 = arith.maximumf %9, %10 : vector<8x256xf32>
    %c0_11 = arith.constant 0 : index
    %c0_12 = arith.constant 0 : index
    %12 = vector.load %arg6[%c0_11, %c0_12] : memref<256x256xf32, #tpu.memory_space<vmem>>, vector<256x256xf32>
    %cst_13 = arith.constant dense<0.000000e+00> : vector<8x256xf32>
    %13 = tpu.matmul %11, %12, %cst_13 {dimension_numbers = #tpu.dot_dimension_numbers<[1], [0], [0], [1], [0, 0, 1, 1], [], []>} : vector<8x256xf32>, vector<256x256xf32>, vector<8x256xf32> -> vector<8x256xf32>
    %c0_14 = arith.constant 0 : index
    %c0_15 = arith.constant 0 : index
    %14 = vector.load %arg7[%c0_14, %c0_15] : memref<1x256xf32, #tpu.memory_space<vmem>>, vector<1x256xf32>
    %15 = vector.broadcast %14 : vector<1x256xf32> to vector<8x256xf32>
    %16 = arith.addf %13, %15 : vector<8x256xf32>
    %cst_16 = arith.constant 0.000000e+00 : f32
    %17 = vector.broadcast %cst_16 : f32 to vector<8x256xf32>
    %18 = arith.maximumf %16, %17 : vector<8x256xf32>
    %c0_17 = arith.constant 0 : index
    %c0_18 = arith.constant 0 : index
    %19 = vector.load %arg8[%c0_17, %c0_18] : memref<1x256xf32, #tpu.memory_space<vmem>>, vector<1x256xf32>
    %20 = vector.broadcast %19 : vector<1x256xf32> to vector<8x256xf32>
    %21 = arith.mulf %18, %20 : vector<8x256xf32>
    %22 = vector.extract_strided_slice %21 {offsets = [0, 0], sizes = [8, 128], strides = [1, 1]} : vector<8x256xf32> to vector<8x128xf32>
    %23 = vector.extract_strided_slice %21 {offsets = [0, 128], sizes = [8, 128], strides = [1, 1]} : vector<8x256xf32> to vector<8x128xf32>
    %24 = arith.addf %22, %23 : vector<8x128xf32>
    %cst_19 = arith.constant dense<0.000000e+00> : vector<8xf32>
    %25 = vector.multi_reduction <add>, %24, %cst_19 [1] : vector<8x128xf32> to vector<8xf32>
    %26 = vector.shape_cast %25 : vector<8xf32> to vector<8x1xf32>
    %c0_20 = arith.constant 0 : index
    %c0_21 = arith.constant 0 : index
    %27 = memref.load %arg9[%c0_20, %c0_21] : memref<1x1xf32, #tpu.memory_space<smem>>
    %28 = vector.broadcast %27 : f32 to vector<8x1xf32>
    %29 = arith.addf %26, %28 : vector<8x1xf32>
    %c0_22 = arith.constant 0 : index
    %c0_23 = arith.constant 0 : index
    %30 = vector.load %arg10[%c0_22, %c0_23] : memref<8x1xf32, #tpu.memory_space<vmem>>, vector<8x1xf32>
    tpu.vector_store %arg10[%c0_22, %c0_23], %29 {strides = array<i32>} : memref<8x1xf32, #tpu.memory_space<vmem>>, vector<8x1xf32>,
    return
  }
  func.func @transform_0(%arg0: i32) -> (i32, i32) {
    %c0_i32 = arith.constant 0 : i32
    %c0_i32_0 = arith.constant 0 : i32
    return %arg0, %c0_i32 : i32, i32
  }
  func.func @transform_1(%arg0: i32) -> (i32, i32) {
    %c0_i32 = arith.constant 0 : i32
    %c0_i32_0 = arith.constant 0 : i32
    return %arg0, %c0_i32 : i32, i32
  }
  func.func @transform_2(%arg0: i32) -> (i32, i32) {
    %c0_i32 = arith.constant 0 : i32
    %c0_i32_0 = arith.constant 0 : i32
    %c0_i32_1 = arith.constant 0 : i32
    return %c0_i32, %c0_i32_0 : i32, i32
  }
  func.func @transform_3(%arg0: i32) -> (i32, i32) {
    %c0_i32 = arith.constant 0 : i32
    %c0_i32_0 = arith.constant 0 : i32
    %c0_i32_1 = arith.constant 0 : i32
    return %c0_i32, %c0_i32_0 : i32, i32
  }
  func.func @transform_4(%arg0: i32) -> (i32, i32) {
    %c0_i32 = arith.constant 0 : i32
    %c0_i32_0 = arith.constant 0 : i32
    %c0_i32_1 = arith.constant 0 : i32
    return %c0_i32, %c0_i32_0 : i32, i32
  }
  func.func @transform_5(%arg0: i32) -> (i32, i32) {
    %c0_i32 = arith.constant 0 : i32
    %c0_i32_0 = arith.constant 0 : i32
    %c0_i32_1 = arith.constant 0 : i32
    return %c0_i32, %c0_i32_0 : i32, i32
  }
  func.func @transform_6(%arg0: i32) -> (i32, i32) {
    %c0_i32 = arith.constant 0 : i32
    %c0_i32_0 = arith.constant 0 : i32
    %c0_i32_1 = arith.constant 0 : i32
    return %c0_i32, %c0_i32_0 : i32, i32
  }
  func.func @transform_7(%arg0: i32) -> (i32, i32) {
    %c0_i32 = arith.constant 0 : i32
    %c0_i32_0 = arith.constant 0 : i32
    %c0_i32_1 = arith.constant 0 : i32
    return %c0_i32, %c0_i32_0 : i32, i32
  }
  func.func @transform_8(%arg0: i32) -> (i32, i32) {
    %c0_i32 = arith.constant 0 : i32
    %c0_i32_0 = arith.constant 0 : i32
    %c0_i32_1 = arith.constant 0 : i32
    return %c0_i32, %c0_i32_0 : i32, i32
  }
  func.func @transform_9(%arg0: i32) -> (i32, i32) {
    %c0_i32 = arith.constant 0 : i32
    %c0_i32_0 = arith.constant 0 : i32
    return %arg0, %c0_i32 : i32, i32
  }
}

</mosaic_0001>

<llo_original>
// kernel: critic_forward.1
$region0: #{critic_forward.1}
  #allocation0 [shape = 'u32[]', space=smem, size = 0x4, offset = 0x4, fixed_abs, tag = 'smem constant byte address 0x4 - core index']
  #allocation1 [shape = 'u32[144,128]{1,0:T(1,128)}', space=vmem, size = 0x12000, scoped, tag = 'internal scratch']
  #allocation2 [shape = 'f32[1,1]{1,0:T(1,128)S(6)}', space=smem, size = 0x200, scoped, tag = 'scoped memory for critic_forward.1']
  %s0 = inlined_call_operand.vmem [shape: f32[8,24], index: 0, kind: input, shape index: {}]
  %s1 = inlined_call_operand.vmem [shape: f32[8,4], index: 1, kind: input, shape index: {}]
  %s2 = inlined_call_operand.hbm [shape: f32[24,256], index: 2, kind: input, shape index: {}]
  %s3 = inlined_call_operand.vmem [shape: f32[4,256], index: 3, kind: input, shape index: {}]
  %s4 = inlined_call_operand.vmem [shape: f32[1,256], index: 4, kind: input, shape index: {}]
  %s5 = inlined_call_operand.hbm [shape: f32[256,256], index: 5, kind: input, shape index: {}]
  %s6 = inlined_call_operand.vmem [shape: f32[1,256], index: 6, kind: input, shape index: {}]
  %s7 = inlined_call_operand.vmem [shape: f32[1,256], index: 7, kind: input, shape index: {}]
  %s8 = inlined_call_operand.<no memory space> [shape: f32[1,1], index: 8, kind: input, shape index: {}]
  %s9 = inlined_call_operand.vmem [shape: f32[8,1], index: 9, kind: output, shape index: {}]
  %s10 = sld [smem:[#allocation0]]
  $region54: #{critic_forward.1} parent=0
    _
  %s12 = ssub.s32 1, %s10
  %s13 = scalar_select 0, %s12, %s10
  %14 = sst [smem:[#allocation2]] %s8
  $region1: #{critic_forward.1} parent=0
    #allocation3 [shape = 'u8[24576]{0}', space=vmem, size = 0x6000, scoped, tag = 'input window, operand 2, single buffered']
    #allocation4 [shape = 's32[1]{0}', space=sflag, size = 0x4, scoped, tag = 'scoped memory for critic_forward.1']
    #allocation5 [shape = 'u8[262144]{0}', space=vmem, size = 0x40000, scoped, tag = 'input window, operand 5, single buffered']
    #allocation6 [shape = 's32[1]{0}', space=sflag, size = 0x4, scoped, tag = 'scoped memory for critic_forward.1']
    %15 = vsyncpa [#allocation4], 0
    %16 = vsyncpa [#allocation6], 0
    // Predicated region
    $region2: #{critic_forward.1} parent=1 // pred_check
      _
    $region3: #{critic_forward.1} parent=1 // pred_check_branch
      %18 = sbr.rel (0) target = $region5
    $region4: #{critic_forward.1} parent=1 // pred_region
      _
    $region5: #{critic_forward.1} parent=1 // pred_fallthru
      _
    // Predicated region
    $region6: #{critic_forward.1} parent=1 // pred_check
      _
    $region7: #{critic_forward.1} parent=1 // pred_check_branch
      %20 = sbr.rel (0) target = $region9
    $region8: #{critic_forward.1} parent=1 // pred_region
      _
    $region9: #{critic_forward.1} parent=1 // pred_fallthru
      _
    // Predicated region
    $region10: #{critic_forward.1} parent=1 // pred_check
      _
    $region11: #{critic_forward.1} parent=1 // pred_check_branch
      %22 = sbr.rel (0) target = $region13
    $region12: #{critic_forward.1} parent=1 // pred_region
      %s24 = ssub.s32 768, 768
      %25 = vsyncadd [#allocation4], %s24
      %s26 = sshll.u32 [#allocation3], 4
      %s27 = int_to_ptr.vmem [resolvable:$true] %s26
      %32 = dma.hbm_to_vmem [thread:$0]  %s2, 768, %s27, [#allocation4], 256, 256, 16
    $region13: #{critic_forward.1} parent=1 // pred_fallthru
      _
    // Predicated region
    $region14: #{critic_forward.1} parent=1 // pred_check
      _
    $region15: #{critic_forward.1} parent=1 // pred_check_branch
      %34 = sbr.rel (0) target = $region17
    $region16: #{critic_forward.1} parent=1 // pred_region
      _
    $region17: #{critic_forward.1} parent=1 // pred_fallthru
      _
    // Predicated region
    $region18: #{critic_forward.1} parent=1 // pred_check
      _
    $region19: #{critic_forward.1} parent=1 // pred_check_branch
      %36 = sbr.rel (0) target = $region21
    $region20: #{critic_forward.1} parent=1 // pred_region
      _
    $region21: #{critic_forward.1} parent=1 // pred_fallthru
      _
    // Predicated region
    $region22: #{critic_forward.1} parent=1 // pred_check
      _
    $region23: #{critic_forward.1} parent=1 // pred_check_branch
      %38 = sbr.rel (0) target = $region25
    $region24: #{critic_forward.1} parent=1 // pred_region
      %s40 = ssub.s32 8192, 8192
      %41 = vsyncadd [#allocation6], %s40
      %s42 = sshll.u32 [#allocation5], 4
      %s43 = int_to_ptr.vmem [resolvable:$true] %s42
      %48 = dma.hbm_to_vmem [thread:$0]  %s5, 8192, %s43, [#allocation6], 256, 256, 16
    $region25: #{critic_forward.1} parent=1 // pred_fallthru
      _
    // Predicated region
    $region26: #{critic_forward.1} parent=1 // pred_check
      _
    $region27: #{critic_forward.1} parent=1 // pred_check_branch
      %50 = sbr.rel (0) target = $region29
    $region28: #{critic_forward.1} parent=1 // pred_region
      _
    $region29: #{critic_forward.1} parent=1 // pred_fallthru
      _
    // Predicated region
    $region30: #{critic_forward.1} parent=1 // pred_check
      _
    $region31: #{critic_forward.1} parent=1 // pred_check_branch
      %52 = sbr.rel (0) target = $region33
    $region32: #{critic_forward.1} parent=1 // pred_region
      _
    $region33: #{critic_forward.1} parent=1 // pred_fallthru
      _
    // Predicated region
    $region34: #{critic_forward.1} parent=1 // pred_check
      _
    $region35: #{critic_forward.1} parent=1 // pred_check_branch
      %54 = sbr.rel (0) target = $region37
    $region36: #{critic_forward.1} parent=1 // pred_region
      _
    $region37: #{critic_forward.1} parent=1 // pred_fallthru
      _
    // Predicated region
    $region38: #{critic_forward.1} parent=1 // pred_check
      _
    $region39: #{critic_forward.1} parent=1 // pred_check_branch
      %56 = sbr.rel (0) target = $region41
    $region40: #{critic_forward.1} parent=1 // pred_region
      %57 = dma.done [#allocation4], 768
    $region41: #{critic_forward.1} parent=1 // pred_fallthru
      _
    // Predicated region
    $region42: #{critic_forward.1} parent=1 // pred_check
      _
    $region43: #{critic_forward.1} parent=1 // pred_check_branch
      %59 = sbr.rel (0) target = $region45
    $region44: #{critic_forward.1} parent=1 // pred_region
      %60 = dma.done [#allocation6], 8192
    $region45: #{critic_forward.1} parent=1 // pred_fallthru
      _
    %v61 = vld [vmem:[%s0] sm:$0xff]
    %v62 = vld [vmem:[#allocation3] sm:$0xff]
    %v63 = vld [vmem:[#allocation3 + $0x8] sm:$0xff]
    %v64 = vld [vmem:[#allocation3 + $0x10] sm:$0xff]
    %v65 = vld [vmem:[#allocation3 + $0x18] sm:$0xff]
    %v66 = vld [vmem:[#allocation3 + $0x20] sm:$0xff]
    %v67 = vld [vmem:[#allocation3 + $0x28] sm:$0xff]
    %v68 = vld [vmem:[%s1] sm:$0xff]
    %v69 = vld [vmem:[%s3] sm:$0xff]
    %v71 = vcombine.high %v69, %v69
    %vm72 = vcmask 31744
    %v74 = vsel %vm72, %v68, 0
    %vm76 = vcmask 1043456
    %v77 = vsel %vm76, %v69, 0
    %v79 = vsel %vm76, %v71, 0
    %81 = vmatprep.subr.mxu0 %v79
    %82 = vmatpush1.msra.mxu0 %v77
    %83 = vmatprep.subr.mxu0 0.0
    %84 = vmatpush1.msra.mxu0 0.0
    %85 = vmatprep.subr.mxu0 0.0
    %86 = vmatpush1.msra.mxu0 0.0
    %87 = vmatprep.subr.mxu0 0.0
    %88 = vmatpush1.msra.mxu0 0.0
    %89 = vmatprep.subr.mxu0 0.0
    %90 = vmatpush1.msra.mxu0 0.0
    %91 = vmatprep.subr.mxu0 0.0
    %92 = vmatpush1.msra.mxu0 0.0
    %93 = vmatprep.subr.mxu0 0.0
    %94 = vmatpush1.msra.mxu0 0.0
    %95 = vmatprep.subr.mxu0 0.0
    %96 = vmatpush1.msra.mxu0 0.0
    %97 = vmatprep.subr.mxu0 0.0
    %98 = vmatpush1.msra.mxu0 0.0
    %99 = vmatprep.subr.mxu0 0.0
    %100 = vmatpush1.msra.mxu0 0.0
    %101 = vmatprep.subr.mxu0 0.0
    %102 = vmatpush1.msra.mxu0 0.0
    %103 = vmatprep.subr.mxu0 0.0
    %104 = vmatpush1.msra.mxu0 0.0
    %105 = vmatprep.subr.mxu0 0.0
    %106 = vmatpush1.msra.mxu0 0.0
    %107 = vmatprep.subr.mxu0 0.0
    %108 = vmatpush1.msra.mxu0 0.0
    %109 = vmatprep.subr.mxu0 0.0
    %110 = vmatpush1.msra.mxu0 0.0
    %111 = vmatprep.subr.mxu0 0.0
    %112 = vmatpush1.msra.mxu0 0.0
    %113 = vmatprep.subr.mxu0 0.0
    %114 = vmatpush1.msra.mxu0 0.0
    %115 = vmatprep.subr.mxu0 0.0
    %116 = vmatpush1.msra.mxu0 0.0
    %117 = vmatprep.subr.mxu0 0.0
    %118 = vmatpush1.msra.mxu0 0.0
    %119 = vmatprep.subr.mxu0 0.0
    %120 = vmatpush1.msra.mxu0 0.0
    %121 = vmatprep.subr.mxu0 0.0
    %122 = vmatpush1.msra.mxu0 0.0
    %123 = vmatprep.subr.mxu0 0.0
    %124 = vmatpush1.msra.mxu0 0.0
    %125 = vmatprep.subr.mxu0 0.0
    %126 = vmatpush1.msra.mxu0 0.0
    %127 = vmatprep.subr.mxu0 0.0
    %128 = vmatpush1.msra.mxu0 0.0
    %129 = vmatprep.subr.mxu0 0.0
    %130 = vmatpush1.msra.mxu0 0.0
    %131 = vmatprep.subr.mxu0 0.0
    %132 = vmatpush1.msra.mxu0 0.0
    %133 = vmatprep.subr.mxu0 0.0
    %134 = vmatpush1.msra.mxu0 0.0
    %135 = vmatprep.subr.mxu0 0.0
    %136 = vmatpush1.msra.mxu0 0.0
    %137 = vmatprep.subr.mxu0 0.0
    %138 = vmatpush1.msra.mxu0 0.0
    %139 = vmatprep.subr.mxu0 0.0
    %140 = vmatpush1.msra.mxu0 0.0
    %141 = vmatprep.subr.mxu0 0.0
    %142 = vmatpush1.msra.mxu0 0.0
    %143 = vmatprep.subr.mxu0 0.0
    %144 = vmatpush1.msra.mxu0 0.0
    %145 = vmatprep.mubr.f32.mxu0 0.0
    %146 = vmatmul.mubr.f32.gmra.mrb[0].mxu0 %v74
    %v147 = vpop.f32.mrb[0].mxu0
    %v148 = vadd.f32 0.0, %v147
    %v149 = vpop.f32.mrb[0].mxu0
    %v150 = vadd.f32 0.0, %v149
    %151 = vdwg.mxu0
    %vm152 = vcmask 195584
    %v154 = vsel %vm152, %v61, 0
    %156 = vmatprep.subr.mxu0 %v63
    %157 = vmatpush1.msra.mxu0 %v62
    %158 = vmatprep.subr.mxu0 %v65
    %159 = vmatpush1.msra.mxu0 %v64
    %160 = vmatprep.subr.mxu0 %v67
    %161 = vmatpush1.msra.mxu0 %v66
    %162 = vmatprep.subr.mxu0 0.0
    %163 = vmatpush1.msra.mxu0 0.0
    %164 = vmatprep.subr.mxu0 0.0
    %165 = vmatpush1.msra.mxu0 0.0
    %166 = vmatprep.subr.mxu0 0.0
    %167 = vmatpush1.msra.mxu0 0.0
    %168 = vmatprep.subr.mxu0 0.0
    %169 = vmatpush1.msra.mxu0 0.0
    %170 = vmatprep.subr.mxu0 0.0
    %171 = vmatpush1.msra.mxu0 0.0
    %172 = vmatprep.subr.mxu0 0.0
    %173 = vmatpush1.msra.mxu0 0.0
    %174 = vmatprep.subr.mxu0 0.0
    %175 = vmatpush1.msra.mxu0 0.0
    %176 = vmatprep.subr.mxu0 0.0
    %177 = vmatpush1.msra.mxu0 0.0
    %178 = vmatprep.subr.mxu0 0.0
    %179 = vmatpush1.msra.mxu0 0.0
    %180 = vmatprep.subr.mxu0 0.0
    %181 = vmatpush1.msra.mxu0 0.0
    %182 = vmatprep.subr.mxu0 0.0
    %183 = vmatpush1.msra.mxu0 0.0
    %184 = vmatprep.subr.mxu0 0.0
    %185 = vmatpush1.msra.mxu0 0.0
    %186 = vmatprep.subr.mxu0 0.0
    %187 = vmatpush1.msra.mxu0 0.0
    %188 = vmatprep.subr.mxu0 0.0
    %189 = vmatpush1.msra.mxu0 0.0
    %190 = vmatprep.subr.mxu0 0.0
    %191 = vmatpush1.msra.mxu0 0.0
    %192 = vmatprep.subr.mxu0 0.0
    %193 = vmatpush1.msra.mxu0 0.0
    %194 = vmatprep.subr.mxu0 0.0
    %195 = vmatpush1.msra.mxu0 0.0
    %196 = vmatprep.subr.mxu0 0.0
    %197 = vmatpush1.msra.mxu0 0.0
    %198 = vmatprep.subr.mxu0 0.0
    %199 = vmatpush1.msra.mxu0 0.0
    %200 = vmatprep.subr.mxu0 0.0
    %201 = vmatpush1.msra.mxu0 0.0
    %202 = vmatprep.subr.mxu0 0.0
    %203 = vmatpush1.msra.mxu0 0.0
    %204 = vmatprep.subr.mxu0 0.0
    %205 = vmatpush1.msra.mxu0 0.0
    %206 = vmatprep.subr.mxu0 0.0
    %207 = vmatpush1.msra.mxu0 0.0
    %208 = vmatprep.subr.mxu0 0.0
    %209 = vmatpush1.msra.mxu0 0.0
    %210 = vmatprep.subr.mxu0 0.0
    %211 = vmatpush1.msra.mxu0 0.0
    %212 = vmatprep.subr.mxu0 0.0
    %213 = vmatpush1.msra.mxu0 0.0
    %214 = vmatprep.subr.mxu0 0.0
    %215 = vmatpush1.msra.mxu0 0.0
    %216 = vmatprep.subr.mxu0 0.0
    %217 = vmatpush1.msra.mxu0 0.0
    %218 = vmatprep.subr.mxu0 0.0
    %219 = vmatpush1.msra.mxu0 0.0
    %220 = vmatprep.mubr.f32.mxu0 0.0
    %221 = vmatmul.mubr.f32.gmra.mrb[0].mxu0 %v154
    %v222 = vpop.f32.mrb[0].mxu0
    %v223 = vadd.f32 %v148, %v222
    %v224 = vpop.f32.mrb[0].mxu0
    %v225 = vadd.f32 %v150, %v224
    %226 = vdwg.mxu0
    %v227 = vld [vmem:[%s4] sm:$0x3]
    %v229 = vlaneseq
    %v230 = vshrl.u32 %v229, 7
    %v231 = vsub.s32 0, %v230
    %v232 = vrot.slane %v227, %v231
    %v233 = vlaneseq
    %v234 = vshrl.u32 %v233, 7
    %v235 = vsub.s32 1, %v234
    %v236 = vrot.slane %v227, %v235
    %v239 = vadd.f32 %v223, %v232
    %v240 = vadd.f32 %v225, %v236
    %v241 = vmax.f32 %v239, 0.0
    %v242 = vmax.f32 %v240, 0.0
    %v243 = vld [vmem:[#allocation5] sm:$0xff]
    %v244 = vld [vmem:[#allocation5 + $0x8] sm:$0xff]
    %v245 = vld [vmem:[#allocation5 + $0x10] sm:$0xff]
    %v246 = vld [vmem:[#allocation5 + $0x18] sm:$0xff]
    %v247 = vld [vmem:[#allocation5 + $0x20] sm:$0xff]
    %v248 = vld [vmem:[#allocation5 + $0x28] sm:$0xff]
    %v249 = vld [vmem:[#allocation5 + $0x30] sm:$0xff]
    %v250 = vld [vmem:[#allocation5 + $0x38] sm:$0xff]
    %v251 = vld [vmem:[#allocation5 + $0x40] sm:$0xff]
    %v252 = vld [vmem:[#allocation5 + $0x48] sm:$0xff]
    %v253 = vld [vmem:[#allocation5 + $0x50] sm:$0xff]
    %v254 = vld [vmem:[#allocation5 + $0x58] sm:$0xff]
    %v255 = vld [vmem:[#allocation5 + $0x60] sm:$0xff]
    %v256 = vld [vmem:[#allocation5 + $0x68] sm:$0xff]
    %v257 = vld [vmem:[#allocation5 + $0x70] sm:$0xff]
    %v258 = vld [vmem:[#allocation5 + $0x78] sm:$0xff]
    %v259 = vld [vmem:[#allocation5 + $0x80] sm:$0xff]
    %v260 = vld [vmem:[#allocation5 + $0x88] sm:$0xff]
    %v261 = vld [vmem:[#allocation5 + $0x90] sm:$0xff]
    %v262 = vld [vmem:[#allocation5 + $0x98] sm:$0xff]
    %v263 = vld [vmem:[#allocation5 + $0xa0] sm:$0xff]
    %v264 = vld [vmem:[#allocation5 + $0xa8] sm:$0xff]
    %v265 = vld [vmem:[#allocation5 + $0xb0] sm:$0xff]
    %v266 = vld [vmem:[#allocation5 + $0xb8] sm:$0xff]
    %v267 = vld [vmem:[#allocation5 + $0xc0] sm:$0xff]
    %v268 = vld [vmem:[#allocation5 + $0xc8] sm:$0xff]
    %v269 = vld [vmem:[#allocation5 + $0xd0] sm:$0xff]
    %v270 = vld [vmem:[#allocation5 + $0xd8] sm:$0xff]
    %v271 = vld [vmem:[#allocation5 + $0xe0] sm:$0xff]
    %v272 = vld [vmem:[#allocation5 + $0xe8] sm:$0xff]
    %v273 = vld [vmem:[#allocation5 + $0xf0] sm:$0xff]
    %v274 = vld [vmem:[#allocation5 + $0xf8] sm:$0xff]
    %v275 = vld [vmem:[#allocation5 + $0x100] sm:$0xff]
    %v276 = vld [vmem:[#allocation5 + $0x108] sm:$0xff]
    %v277 = vld [vmem:[#allocation5 + $0x110] sm:$0xff]
    %v278 = vld [vmem:[#allocation5 + $0x118] sm:$0xff]
    %v279 = vld [vmem:[#allocation5 + $0x120] sm:$0xff]
    %v280 = vld [vmem:[#allocation5 + $0x128] sm:$0xff]
    %v281 = vld [vmem:[#allocation5 + $0x130] sm:$0xff]
    %v282 = vld [vmem:[#allocation5 + $0x138] sm:$0xff]
    %v283 = vld [vmem:[#allocation5 + $0x140] sm:$0xff]
    %v284 = vld [vmem:[#allocation5 + $0x148] sm:$0xff]
    %v285 = vld [vmem:[#allocation5 + $0x150] sm:$0xff]
    %v286 = vld [vmem:[#allocation5 + $0x158] sm:$0xff]
    %v287 = vld [vmem:[#allocation5 + $0x160] sm:$0xff]
    %v288 = vld [vmem:[#allocation5 + $0x168] sm:$0xff]
    %v289 = vld [vmem:[#allocation5 + $0x170] sm:$0xff]
    %v290 = vld [vmem:[#allocation5 + $0x178] sm:$0xff]
    %v291 = vld [vmem:[#allocation5 + $0x180] sm:$0xff]
    %v292 = vld [vmem:[#allocation5 + $0x188] sm:$0xff]
    %v293 = vld [vmem:[#allocation5 + $0x190] sm:$0xff]
    %v294 = vld [vmem:[#allocation5 + $0x198] sm:$0xff]
    %v295 = vld [vmem:[#allocation5 + $0x1a0] sm:$0xff]
    %v296 = vld [vmem:[#allocation5 + $0x1a8] sm:$0xff]
    %v297 = vld [vmem:[#allocation5 + $0x1b0] sm:$0xff]
    %v298 = vld [vmem:[#allocation5 + $0x1b8] sm:$0xff]
    %v299 = vld [vmem:[#allocation5 + $0x1c0] sm:$0xff]
    %v300 = vld [vmem:[#allocation5 + $0x1c8] sm:$0xff]
    %v301 = vld [vmem:[#allocation5 + $0x1d0] sm:$0xff]
    %v302 = vld [vmem:[#allocation5 + $0x1d8] sm:$0xff]
    %v303 = vld [vmem:[#allocation5 + $0x1e0] sm:$0xff]
    %v304 = vld [vmem:[#allocation5 + $0x1e8] sm:$0xff]
    %v305 = vld [vmem:[#allocation5 + $0x1f0] sm:$0xff]
    %v306 = vld [vmem:[#allocation5 + $0x1f8] sm:$0xff]
    %v307 = vld [vmem:[%s6] sm:$0x3]
    %v309 = vlaneseq
    %v310 = vshrl.u32 %v309, 7
    %v311 = vsub.s32 0, %v310
    %v312 = vrot.slane %v307, %v311
    %v313 = vlaneseq
    %v314 = vshrl.u32 %v313, 7
    %v315 = vsub.s32 1, %v314
    %v316 = vrot.slane %v307, %v315
    %319 = vmatprep.subr.mxu0 %v244
    %320 = vmatpush1.msra.mxu0 %v243
    %321 = vmatprep.subr.mxu0 %v246
    %322 = vmatpush1.msra.mxu0 %v245
    %323 = vmatprep.subr.mxu0 %v248
    %324 = vmatpush1.msra.mxu0 %v247
    %325 = vmatprep.subr.mxu0 %v250
    %326 = vmatpush1.msra.mxu0 %v249
    %327 = vmatprep.subr.mxu0 %v252
    %328 = vmatpush1.msra.mxu0 %v251
    %329 = vmatprep.subr.mxu0 %v254
    %330 = vmatpush1.msra.mxu0 %v253
    %331 = vmatprep.subr.mxu0 %v256
    %332 = vmatpush1.msra.mxu0 %v255
    %333 = vmatprep.subr.mxu0 %v258
    %334 = vmatpush1.msra.mxu0 %v257
    %335 = vmatprep.subr.mxu0 %v260
    %336 = vmatpush1.msra.mxu0 %v259
    %337 = vmatprep.subr.mxu0 %v262
    %338 = vmatpush1.msra.mxu0 %v261
    %339 = vmatprep.subr.mxu0 %v264
    %340 = vmatpush1.msra.mxu0 %v263
    %341 = vmatprep.subr.mxu0 %v266
    %342 = vmatpush1.msra.mxu0 %v265
    %343 = vmatprep.subr.mxu0 %v268
    %344 = vmatpush1.msra.mxu0 %v267
    %345 = vmatprep.subr.mxu0 %v270
    %346 = vmatpush1.msra.mxu0 %v269
    %347 = vmatprep.subr.mxu0 %v272
    %348 = vmatpush1.msra.mxu0 %v271
    %349 = vmatprep.subr.mxu0 %v274
    %350 = vmatpush1.msra.mxu0 %v273
    %351 = vmatprep.subr.mxu0 %v276
    %352 = vmatpush1.msra.mxu0 %v275
    %353 = vmatprep.subr.mxu0 %v278
    %354 = vmatpush1.msra.mxu0 %v277
    %355 = vmatprep.subr.mxu0 %v280
    %356 = vmatpush1.msra.mxu0 %v279
    %357 = vmatprep.subr.mxu0 %v282
    %358 = vmatpush1.msra.mxu0 %v281
    %359 = vmatprep.subr.mxu0 %v284
    %360 = vmatpush1.msra.mxu0 %v283
    %361 = vmatprep.subr.mxu0 %v286
    %362 = vmatpush1.msra.mxu0 %v285
    %363 = vmatprep.subr.mxu0 %v288
    %364 = vmatpush1.msra.mxu0 %v287
    %365 = vmatprep.subr.mxu0 %v290
    %366 = vmatpush1.msra.mxu0 %v289
    %367 = vmatprep.subr.mxu0 %v292
    %368 = vmatpush1.msra.mxu0 %v291
    %369 = vmatprep.subr.mxu0 %v294
    %370 = vmatpush1.msra.mxu0 %v293
    %371 = vmatprep.subr.mxu0 %v296
    %372 = vmatpush1.msra.mxu0 %v295
    %373 = vmatprep.subr.mxu0 %v298
    %374 = vmatpush1.msra.mxu0 %v297
    %375 = vmatprep.subr.mxu0 %v300
    %376 = vmatpush1.msra.mxu0 %v299
    %377 = vmatprep.subr.mxu0 %v302
    %378 = vmatpush1.msra.mxu0 %v301
    %379 = vmatprep.subr.mxu0 %v304
    %380 = vmatpush1.msra.mxu0 %v303
    %381 = vmatprep.subr.mxu0 %v306
    %382 = vmatpush1.msra.mxu0 %v305
    %383 = vmatprep.mubr.f32.mxu0 %v242
    %384 = vmatmul.mubr.f32.gmra.mrb[0].mxu0 %v241
    %v385 = vpop.f32.mrb[0].mxu0
    %v386 = vadd.f32 %v312, %v385
    %v387 = vpop.f32.mrb[0].mxu0
    %v388 = vadd.f32 %v316, %v387
    %389 = vdwg.mxu0
    %v390 = vmax.f32 %v386, 0.0
    %v391 = vmax.f32 %v388, 0.0
    %v392 = vld [vmem:[%s7] sm:$0x3]
    %v394 = vlaneseq
    %v395 = vshrl.u32 %v394, 7
    %v396 = vsub.s32 0, %v395
    %v397 = vrot.slane %v392, %v396
    %v398 = vlaneseq
    %v399 = vshrl.u32 %v398, 7
    %v400 = vsub.s32 1, %v399
    %v401 = vrot.slane %v392, %v400
    %v404 = vmul.f32 %v390, %v397
    %v405 = vmul.f32 %v391, %v401
    %v406 = vadd.f32 %v404, %v405
    %407 = vadd.xlane.f32.xlu0 %v406
    %v408 = vpop.xlane.xlu0 %407
    %s409 = sld [smem:[#allocation2]]
    %v410 = vstv %s409
    %v411 = vadd.f32 %v408, %v410
    %vm412 = vcmask 7168
    %413 = vst.msk [vmem:[%s9] sm:$0xff] %vm412, %v411
    // Predicated region
    $region46: #{critic_forward.1} parent=1 // pred_check
      _
    $region47: #{critic_forward.1} parent=1 // pred_check_branch
      %415 = sbr.rel (0) target = $region49
    $region48: #{critic_forward.1} parent=1 // pred_region
      _
    $region49: #{critic_forward.1} parent=1 // pred_fallthru
      _
    // Predicated region
    $region50: #{critic_forward.1} parent=1 // pred_check
      _
    $region51: #{critic_forward.1} parent=1 // pred_check_branch
      %417 = sbr.rel (0) target = $region53
    $region52: #{critic_forward.1} parent=1 // pred_region
      _
    $region53: #{critic_forward.1} parent=1 // pred_fallthru
      _
    %418 = vsyncpa [#allocation4], 1
    %419 = vsyncpa [#allocation6], 1

</llo_original>
